<compile_context>
chip_gen: v5e
topology: v5e:2x2
jax: 0.10.0
libtpu: 0.0.40
codegen_flags: <defaults>
</compile_context>

<pallas_src>
import functools

import jax
import jax.numpy as jnp
from jax.experimental import pallas as pl
from jax.experimental.pallas import tpu as pltpu

_LANE = 128
_SUBLANE = 8


def _round_up(x, m):
    return ((x + m - 1) // m) * m


def _pad_dim(d):
    # Lane padding for the small resident params only. 256-align genuinely
    # large dims (fills the 2x256^2 MXU on v6e/v7x); never inflate small dims
    # beyond 128.
    if d >= 256:
        return _round_up(d, 256)
    return _round_up(max(d, _LANE), _LANE)


def _vmem_capacity_bytes():
    # Per-TensorCore VMEM (128 MiB on v5e/v6e, 64 MiB on v7x). Conservative
    # fallback if the query is unavailable.
    try:
        info = pltpu.get_tpu_info()
        cap = getattr(info, "vmem_capacity_bytes", None)
        if cap:
            return int(cap)
    except Exception:
        pass
    return 64 * 1024 * 1024


def rbf_kernel(x_ref, neg2ct_ref, c2_ref, sig_ref, w_ref, b_ref, out_ref, *,
               mxu_dtype):
    x = x_ref[...].astype(jnp.float32)                        # (TILE_N, D)

    # MXU: x @ (-2 * centers)^T  (bf16 inputs on v5e/v6e/v7x, f32 accumulate).
    xc = jnp.dot(x.astype(mxu_dtype), neg2ct_ref[...],
                 preferred_element_type=jnp.float32)          # (TILE_N, C)

    # ||x||^2 in f32: VPU mul + XLU reduce, once per tile.
    x2 = jnp.sum(x * x, axis=-1, keepdims=True)               # (TILE_N, 1)

    # ||x - c||^2 via the expansion; clamp so cancellation can't go negative
    # (keeps phi <= 1, matching the (x - c)^2 reference).
    dist2 = jnp.maximum(x2 + xc + c2_ref[...], 0.0)           # (TILE_N, C)

    # f32 exp on the EUP (v5e has no bf16 EUP); cast only for the second MXU op.
    phi = jnp.exp(-sig_ref[...] * dist2)                      # (TILE_N, C)

    out = jnp.dot(phi.astype(mxu_dtype), w_ref[...],
                  preferred_element_type=jnp.float32) + b_ref[...]
    out_ref[...] = out.astype(out_ref.dtype)


def rbf_net_forward(x, centers, sigmas, weight, bias, *, tile_n=None,
                    mxu_dtype=jnp.bfloat16):
    """x: (N, indim); centers: (C, indim); sigmas: (C,);
    weight: (outdim, C) [torch Linear layout]; bias: (outdim,).
    Returns (N, outdim) in x.dtype."""
    n, indim = x.shape
    num_centers = centers.shape[0]
    outdim = weight.shape[0]
    f32 = jnp.float32

    # Padding only on the small resident params. Output keeps its true width
    # when small (<128): masked stores beat writing a 128-wide padded slab.
    c_pad = _pad_dim(num_centers)
    o_out = outdim if outdim < _LANE else _pad_dim(outdim)

    # Resident params, zero-padded (padded centers: sigma = 0 and zero W rows,
    # so they contribute nothing) and hoisted per-center constants.
    centers_p = jnp.zeros((c_pad, indim), f32).at[:num_centers, :].set(
        centers.astype(f32))
    sig_p = jnp.zeros((1, c_pad), f32).at[0, :num_centers].set(
        sigmas.astype(f32))
    w_p = jnp.zeros((c_pad, o_out), f32).at[:num_centers, :outdim].set(
        weight.T.astype(f32))
    b_p = jnp.zeros((1, o_out), f32).at[0, :outdim].set(bias.astype(f32))

    neg2ct = (-2.0 * centers_p).T.astype(mxu_dtype)            # (D, C) for MXU
    c2 = jnp.sum(centers_p * centers_p, axis=-1)[None, :]      # (1, C) f32
    w_mxu = w_p.astype(mxu_dtype)                              # (C, O) for MXU

    x_bytes = jnp.dtype(x.dtype).itemsize
    mxu_bytes = jnp.dtype(mxu_dtype).itemsize

    # ---- generation-aware VMEM budget & batch tile --------------------------
    vmem_cap = _vmem_capacity_bytes()
    vmem_limit = int(0.8 * vmem_cap)          # ~51 MiB v7x, ~102 MiB v5e/v6e

    resident = (indim * c_pad * mxu_bytes + c_pad * o_out * mxu_bytes
                + 2 * c_pad * 4 + o_out * 4)
    # Per-batch-row VMEM: double-buffered x & out blocks + f32 (tile, C)
    # intermediates (xc / dist2 / phi live ranges).
    per_row = 2 * indim * x_bytes + 2 * o_out * x_bytes + 4 * c_pad * 4
    if tile_n is None:
        avail = max(vmem_limit - 2 * resident, per_row * _SUBLANE)
        tile_n = min(2048, avail // per_row)
    tile_n = max(_SUBLANE,
                 (min(int(tile_n), _round_up(n, _SUBLANE)) // _SUBLANE)
                 * _SUBLANE)
    # Megacore: if the batch is big enough to split, guarantee >= 2 grid steps
    # so v7x's second TensorCore isn't idle (harmless on 1-core chips).
    if n >= 2 * _SUBLANE and pl.cdiv(n, tile_n) < 2:
        tile_n = _round_up(pl.cdiv(n, 2), _SUBLANE)

    grid = (pl.cdiv(n, tile_n),)

    cost = pl.CostEstimate(
        flops=2 * n * (indim * c_pad + c_pad * o_out),
        transcendentals=n * c_pad,
        bytes_accessed=(n * indim * x_bytes + n * o_out * x_bytes + resident))

    out = pl.pallas_call(
        functools.partial(rbf_kernel, mxu_dtype=mxu_dtype),
        out_shape=jax.ShapeDtypeStruct((n, o_out), x.dtype),
        grid=grid,
        in_specs=[
            pl.BlockSpec((tile_n, indim), lambda i: (i, 0)),   # x (streamed)
            pl.BlockSpec((indim, c_pad), lambda i: (0, 0)),    # -2*centers^T
            pl.BlockSpec((1, c_pad), lambda i: (0, 0)),        # ||c||^2
            pl.BlockSpec((1, c_pad), lambda i: (0, 0)),        # sigma
            pl.BlockSpec((c_pad, o_out), lambda i: (0, 0)),    # W^T (C, O)
            pl.BlockSpec((1, o_out), lambda i: (0, 0)),        # bias
        ],
        out_specs=pl.BlockSpec((tile_n, o_out), lambda i: (i, 0)),
        compiler_params=pltpu.CompilerParams(
            dimension_semantics=("parallel",),
            vmem_limit_bytes=vmem_limit),
        cost_estimate=cost,
    )(x, neg2ct, c2, sig_p, w_mxu, b_p)

    return out if o_out == outdim else out[:, :outdim]


def reference_forward(x, centers, sigmas, weight, bias):
    # Direct translation of the PyTorch forward (per-center (x - c)^2).
    diff = x[:, None, :] - centers[None, :, :]            # (N, C, D)
    dist2 = jnp.sum(diff * diff, axis=-1)                 # (N, C)
    phi = jnp.exp(-sigmas[None, :] * dist2)               # (N, C)
    return phi @ weight.T + bias[None, :]                 # (N, O)


if __name__ == "__main__":
    # Shapes consistent with the module: N samples of dim `indim`,
    # `num_centers` RBF centers, `outdim` outputs.
    N, indim, num_centers, outdim = 8, 16, 32, 4

    key = jax.random.PRNGKey(0)
    k_x, k_c, k_w, k_b, k_x2 = jax.random.split(key, 5)

    x = jax.random.normal(k_x, (N, indim), dtype=jnp.float32)

    # Parameter init mirroring RBFNet.__init__:
    #   centers ~ U(-1, 1), sigmas = 0.1, linear = default torch Linear init.
    centers = jax.random.uniform(k_c, (num_centers, indim),
                                 minval=-1.0, maxval=1.0, dtype=jnp.float32)
    sigmas = jnp.full((num_centers,), 0.1, dtype=jnp.float32)
    bound = 1.0 / (num_centers ** 0.5)
    weight = jax.random.uniform(k_w, (outdim, num_centers),
                                minval=-bound, maxval=bound, dtype=jnp.float32)
    bias = jax.random.uniform(k_b, (outdim,),
                              minval=-bound, maxval=bound, dtype=jnp.float32)

    ref = reference_forward(x, centers, sigmas, weight, bias)

    # f32-MXU path: tight check against the reference.
    out_f32 = jax.block_until_ready(
        rbf_net_forward(x, centers, sigmas, weight, bias,
                        mxu_dtype=jnp.float32))
    assert out_f32.shape == (N, outdim)
    assert jnp.allclose(out_f32, ref, atol=1e-4, rtol=1e-4), "f32 mismatch"

    # Default bf16-MXU path (perf path on v6e/v7x): looser tolerance.
    out_bf16 = jax.block_until_ready(
        rbf_net_forward(x, centers, sigmas, weight, bias))
    assert jnp.allclose(out_bf16, ref, atol=2e-2, rtol=2e-2), "bf16 mismatch"

    # Exercise the multi-tile batch grid with a partial boundary block
    # (N=600 not a multiple of tile_n=256 -> grid of 3, last block masked).
    x_big = jax.random.normal(k_x2, (600, indim), dtype=jnp.float32)
    ref_big = reference_forward(x_big, centers, sigmas, weight, bias)
    out_big = jax.block_until_ready(
        rbf_net_forward(x_big, centers, sigmas, weight, bias,
                        tile_n=256, mxu_dtype=jnp.float32))
    assert out_big.shape == (600, outdim)
    assert jnp.allclose(out_big, ref_big, atol=1e-4, rtol=1e-4), "grid mismatch"

    print("KERNEL_OK")
</pallas_src>

<mosaic_0001>
module attributes {stable_mosaic.version = 11 : i64} {
  func.func @rbf_kernel(%arg0: i32, %arg1: memref<8x16xf32, #tpu.memory_space<vmem>>, %arg2: memref<16x128xf32, #tpu.memory_space<vmem>>, %arg3: memref<1x128xf32, #tpu.memory_space<vmem>>, %arg4: memref<1x128xf32, #tpu.memory_space<vmem>>, %arg5: memref<128x4xf32, #tpu.memory_space<vmem>>, %arg6: memref<1x4xf32, #tpu.memory_space<vmem>>, %arg7: memref<8x4xf32, #tpu.memory_space<vmem>>) attributes {dimension_semantics = [#tpu.dimension_semantics<parallel>], iteration_bounds = array<i64: 1>, scalar_prefetch = 0 : i64, scratch_operands = 0 : i64, tpu.core_type = #tpu.core_type<tc>, window_params = [{transform_indices = @transform_0, window_bounds = array<i64: 8, 16>}, {pipeline_mode = #tpu.pipeline_mode<synchronous>, transform_indices = @transform_1, window_bounds = array<i64: 16, 128>}, {pipeline_mode = #tpu.pipeline_mode<synchronous>, transform_indices = @transform_2, window_bounds = array<i64: 1, 128>}, {pipeline_mode = #tpu.pipeline_mode<synchronous>, transform_indices = @transform_3, window_bounds = array<i64: 1, 128>}, {pipeline_mode = #tpu.pipeline_mode<synchronous>, transform_indices = @transform_4, window_bounds = array<i64: 128, 4>}, {pipeline_mode = #tpu.pipeline_mode<synchronous>, transform_indices = @transform_5, window_bounds = array<i64: 1, 4>}, {transform_indices = @transform_6, window_bounds = array<i64: 8, 4>}]} {
    %c0 = arith.constant 0 : index
    %c0_0 = arith.constant 0 : index
    %0 = vector.load %arg1[%c0, %c0_0] : memref<8x16xf32, #tpu.memory_space<vmem>>, vector<8x16xf32>
    %c0_1 = arith.constant 0 : index
    %c0_2 = arith.constant 0 : index
    %1 = vector.load %arg2[%c0_1, %c0_2] : memref<16x128xf32, #tpu.memory_space<vmem>>, vector<16x128xf32>
    %cst = arith.constant dense<0.000000e+00> : vector<8x128xf32>
    %2 = tpu.matmul %0, %1, %cst {dimension_numbers = #tpu.dot_dimension_numbers<[1], [0], [0], [1], [0, 0, 1, 1], [], []>} : vector<8x16xf32>, vector<16x128xf32>, vector<8x128xf32> -> vector<8x128xf32>
    %3 = arith.mulf %0, %0 : vector<8x16xf32>
    %cst_3 = arith.constant dense<0.000000e+00> : vector<8xf32>
    %4 = vector.multi_reduction <add>, %3, %cst_3 [1] : vector<8x16xf32> to vector<8xf32>
    %5 = vector.shape_cast %4 : vector<8xf32> to vector<8x1xf32>
    %6 = vector.broadcast %5 : vector<8x1xf32> to vector<8x128xf32>
    %7 = arith.addf %6, %2 : vector<8x128xf32>
    %c0_4 = arith.constant 0 : index
    %c0_5 = arith.constant 0 : index
    %8 = vector.load %arg3[%c0_4, %c0_5] : memref<1x128xf32, #tpu.memory_space<vmem>>, vector<1x128xf32>
    %9 = vector.broadcast %8 : vector<1x128xf32> to vector<8x128xf32>
    %10 = arith.addf %7, %9 : vector<8x128xf32>
    %cst_6 = arith.constant 0.000000e+00 : f32
    %11 = vector.broadcast %cst_6 : f32 to vector<8x128xf32>
    %12 = arith.maximumf %10, %11 : vector<8x128xf32>
    %c0_7 = arith.constant 0 : index
    %c0_8 = arith.constant 0 : index
    %13 = vector.load %arg4[%c0_7, %c0_8] : memref<1x128xf32, #tpu.memory_space<vmem>>, vector<1x128xf32>
    %cst_9 = arith.constant 0.000000e+00 : f32
    %14 = vector.broadcast %cst_9 : f32 to vector<1x128xf32>
    %15 = arith.subf %14, %13 : vector<1x128xf32>
    %16 = vector.broadcast %15 : vector<1x128xf32> to vector<8x128xf32>
    %17 = arith.mulf %16, %12 : vector<8x128xf32>
    %18 = math.exp %17 : vector<8x128xf32>
    %c0_10 = arith.constant 0 : index
    %c0_11 = arith.constant 0 : index
    %19 = vector.load %arg5[%c0_10, %c0_11] : memref<128x4xf32, #tpu.memory_space<vmem>>, vector<128x4xf32>
    %cst_12 = arith.constant dense<0.000000e+00> : vector<8x4xf32>
    %20 = tpu.matmul %18, %19, %cst_12 {dimension_numbers = #tpu.dot_dimension_numbers<[1], [0], [0], [1], [0, 0, 1, 1], [], []>} : vector<8x128xf32>, vector<128x4xf32>, vector<8x4xf32> -> vector<8x4xf32>
    %c0_13 = arith.constant 0 : index
    %c0_14 = arith.constant 0 : index
    %21 = vector.load %arg6[%c0_13, %c0_14] : memref<1x4xf32, #tpu.memory_space<vmem>>, vector<1x4xf32>
    %22 = vector.broadcast %21 : vector<1x4xf32> to vector<8x4xf32>
    %23 = arith.addf %20, %22 : vector<8x4xf32>
    %c0_15 = arith.constant 0 : index
    %c0_16 = arith.constant 0 : index
    %24 = vector.load %arg7[%c0_15, %c0_16] : memref<8x4xf32, #tpu.memory_space<vmem>>, vector<8x4xf32>
    tpu.vector_store %arg7[%c0_15, %c0_16], %23 {strides = array<i32>} : memref<8x4xf32, #tpu.memory_space<vmem>>, vector<8x4xf32>,
    return
  }
  func.func @transform_0(%arg0: i32) -> (i32, i32) {
    %c0_i32 = arith.constant 0 : i32
    %c0_i32_0 = arith.constant 0 : i32
    return %arg0, %c0_i32 : i32, i32
  }
  func.func @transform_1(%arg0: i32) -> (i32, i32) {
    %c0_i32 = arith.constant 0 : i32
    %c0_i32_0 = arith.constant 0 : i32
    %c0_i32_1 = arith.constant 0 : i32
    return %c0_i32, %c0_i32_0 : i32, i32
  }
  func.func @transform_2(%arg0: i32) -> (i32, i32) {
    %c0_i32 = arith.constant 0 : i32
    %c0_i32_0 = arith.constant 0 : i32
    %c0_i32_1 = arith.constant 0 : i32
    return %c0_i32, %c0_i32_0 : i32, i32
  }
  func.func @transform_3(%arg0: i32) -> (i32, i32) {
    %c0_i32 = arith.constant 0 : i32
    %c0_i32_0 = arith.constant 0 : i32
    %c0_i32_1 = arith.constant 0 : i32
    return %c0_i32, %c0_i32_0 : i32, i32
  }
  func.func @transform_4(%arg0: i32) -> (i32, i32) {
    %c0_i32 = arith.constant 0 : i32
    %c0_i32_0 = arith.constant 0 : i32
    %c0_i32_1 = arith.constant 0 : i32
    return %c0_i32, %c0_i32_0 : i32, i32
  }
  func.func @transform_5(%arg0: i32) -> (i32, i32) {
    %c0_i32 = arith.constant 0 : i32
    %c0_i32_0 = arith.constant 0 : i32
    %c0_i32_1 = arith.constant 0 : i32
    return %c0_i32, %c0_i32_0 : i32, i32
  }
  func.func @transform_6(%arg0: i32) -> (i32, i32) {
    %c0_i32 = arith.constant 0 : i32
    %c0_i32_0 = arith.constant 0 : i32
    return %arg0, %c0_i32 : i32, i32
  }
}

</mosaic_0001>

<llo_original>
// kernel: tpu_custom_call.1
$region0: #{tpu_custom_call.1}
  #allocation0 [shape = 'u32[]', space=smem, size = 0x4, offset = 0x4, fixed_abs, tag = 'smem constant byte address 0x4 - core index']
  #allocation1 [shape = 'u32[72,128]{1,0:T(1,128)}', space=vmem, size = 0x9000, scoped, tag = 'internal scratch']
  %s0 = inlined_call_operand.vmem [shape: f32[8,16], index: 0, kind: input, shape index: {}]
  %s1 = inlined_call_operand.vmem [shape: f32[16,128], index: 1, kind: input, shape index: {}]
  %s2 = inlined_call_operand.vmem [shape: f32[1,128], index: 2, kind: input, shape index: {}]
  %s3 = inlined_call_operand.vmem [shape: f32[1,128], index: 3, kind: input, shape index: {}]
  %s4 = inlined_call_operand.vmem [shape: f32[128,4], index: 4, kind: input, shape index: {}]
  %s5 = inlined_call_operand.vmem [shape: f32[1,4], index: 5, kind: input, shape index: {}]
  %s6 = inlined_call_operand.vmem [shape: f32[8,4], index: 6, kind: output, shape index: {}]
  %s7 = sld [smem:[#allocation0]]
  $region34: #{tpu_custom_call.1} parent=0
    _
  %s9 = ssub.s32 1, %s7
  %s10 = scalar_select 0, %s9, %s7
  // Predicated region
  $region2: #{tpu_custom_call.1} parent=0 // pred_check
    _
  $region3: #{tpu_custom_call.1} parent=0 // pred_check_branch
    %12 = sbr.rel (0) target = $region5
  $region4: #{tpu_custom_call.1} parent=0 // pred_region
    _
  $region5: #{tpu_custom_call.1} parent=0 // pred_fallthru
    _
  // Predicated region
  $region6: #{tpu_custom_call.1} parent=0 // pred_check
    _
  $region7: #{tpu_custom_call.1} parent=0 // pred_check_branch
    %14 = sbr.rel (0) target = $region9
  $region8: #{tpu_custom_call.1} parent=0 // pred_region
    _
  $region9: #{tpu_custom_call.1} parent=0 // pred_fallthru
    _
  // Predicated region
  $region10: #{tpu_custom_call.1} parent=0 // pred_check
    _
  $region11: #{tpu_custom_call.1} parent=0 // pred_check_branch
    %16 = sbr.rel (0) target = $region13
  $region12: #{tpu_custom_call.1} parent=0 // pred_region
    _
  $region13: #{tpu_custom_call.1} parent=0 // pred_fallthru
    _
  // Predicated region
  $region14: #{tpu_custom_call.1} parent=0 // pred_check
    _
  $region15: #{tpu_custom_call.1} parent=0 // pred_check_branch
    %18 = sbr.rel (0) target = $region17
  $region16: #{tpu_custom_call.1} parent=0 // pred_region
    _
  $region17: #{tpu_custom_call.1} parent=0 // pred_fallthru
    _
  // Predicated region
  $region18: #{tpu_custom_call.1} parent=0 // pred_check
    _
  $region19: #{tpu_custom_call.1} parent=0 // pred_check_branch
    %20 = sbr.rel (0) target = $region21
  $region20: #{tpu_custom_call.1} parent=0 // pred_region
    _
  $region21: #{tpu_custom_call.1} parent=0 // pred_fallthru
    _
  // Predicated region
  $region22: #{tpu_custom_call.1} parent=0 // pred_check
    _
  $region23: #{tpu_custom_call.1} parent=0 // pred_check_branch
    %22 = sbr.rel (0) target = $region25
  $region24: #{tpu_custom_call.1} parent=0 // pred_region
    _
  $region25: #{tpu_custom_call.1} parent=0 // pred_fallthru
    _
  %v23 = vld [vmem:[%s0] sm:$0xff]
  %v24 = vld [vmem:[%s1] sm:$0xff]
  %v25 = vld [vmem:[%s1 + $0x8] sm:$0xff]
  %vm26 = vcmask 130048
  %v28 = vsel %vm26, %v23, 0
  %30 = vmatpush.msra.mxu0 0.0
  %31 = vmatpush.msra.mxu0 0.0
  %32 = vmatpush.msra.mxu0 0.0
  %33 = vmatpush.msra.mxu0 0.0
  %34 = vmatpush.msra.mxu0 0.0
  %35 = vmatpush.msra.mxu0 0.0
  %36 = vmatpush.msra.mxu0 0.0
  %37 = vmatpush.msra.mxu0 0.0
  %38 = vmatpush.msra.mxu0 0.0
  %39 = vmatpush.msra.mxu0 0.0
  %40 = vmatpush.msra.mxu0 0.0
  %41 = vmatpush.msra.mxu0 0.0
  %42 = vmatpush.msra.mxu0 0.0
  %43 = vmatpush.msra.mxu0 0.0
  %44 = vmatpush.msra.mxu0 %v25
  %45 = vmatpush.msra.mxu0 %v24
  %46 = vmatmul.f32.gmra.mxu0 %v28
  %v47 = vpop.f32.mrf.mxu0
  %v48 = vadd.f32 0.0, %v47
  %49 = vdwg.mxu0
  %v50 = vmul.f32 %v23, %v23
  %v51 = vsel %vm26, %v50, 0.0
  %52 = vadd.xlane.f32.xlu0 %v51
  %v53 = vpop.xlane.xlu0 %52
  %v54 = vadd.f32 %v53, %v48
  %v55 = vld [vmem:[%s2] sm:$0x1]
  %v57 = vperm.slane %v55, 0
  %v59 = vadd.f32 %v54, %v57
  %v60 = vmax.f32 %v59, 0.0
  %v61 = vld [vmem:[%s3] sm:$0x1]
  %v62 = vsub.f32 0.0, %v61
  %v64 = vperm.slane %v62, 0
  %v66 = vmul.f32 %v64, %v60
  %v67 = vmul.f32 %v66, 1.442695
  %v68 = vpow.pop %v67
  %v69 = vld [vmem:[%s4] sm:$0xff]
  %v70 = vld [vmem:[%s4 + $0x8] sm:$0xff]
  %v71 = vld [vmem:[%s4 + $0x10] sm:$0xff]
  %v72 = vld [vmem:[%s4 + $0x18] sm:$0xff]
  %v73 = vld [vmem:[%s4 + $0x20] sm:$0xff]
  %v74 = vld [vmem:[%s4 + $0x28] sm:$0xff]
  %v75 = vld [vmem:[%s4 + $0x30] sm:$0xff]
  %v76 = vld [vmem:[%s4 + $0x38] sm:$0xff]
  %v77 = vld [vmem:[%s4 + $0x40] sm:$0xff]
  %v78 = vld [vmem:[%s4 + $0x48] sm:$0xff]
  %v79 = vld [vmem:[%s4 + $0x50] sm:$0xff]
  %v80 = vld [vmem:[%s4 + $0x58] sm:$0xff]
  %v81 = vld [vmem:[%s4 + $0x60] sm:$0xff]
  %v82 = vld [vmem:[%s4 + $0x68] sm:$0xff]
  %v83 = vld [vmem:[%s4 + $0x70] sm:$0xff]
  %v84 = vld [vmem:[%s4 + $0x78] sm:$0xff]
  %v85 = vld [vmem:[%s5] sm:$0x1]
  %v87 = vperm.slane %v85, 0
  %89 = vmatpush.msra.mxu0 %v84
  %90 = vmatpush.msra.mxu0 %v83
  %91 = vmatpush.msra.mxu0 %v82
  %92 = vmatpush.msra.mxu0 %v81
  %93 = vmatpush.msra.mxu0 %v80
  %94 = vmatpush.msra.mxu0 %v79
  %95 = vmatpush.msra.mxu0 %v78
  %96 = vmatpush.msra.mxu0 %v77
  %97 = vmatpush.msra.mxu0 %v76
  %98 = vmatpush.msra.mxu0 %v75
  %99 = vmatpush.msra.mxu0 %v74
  %100 = vmatpush.msra.mxu0 %v73
  %101 = vmatpush.msra.mxu0 %v72
  %102 = vmatpush.msra.mxu0 %v71
  %103 = vmatpush.msra.mxu0 %v70
  %104 = vmatpush.msra.mxu0 %v69
  %105 = vmatmul.f32.gmra.mxu0 %v68
  %v106 = vpop.f32.mrf.mxu0
  %v107 = vadd.f32 %v87, %v106
  %108 = vdwg.mxu0
  %vm109 = vcmask 31744
  %110 = vst.msk [vmem:[%s6] sm:$0xff] %vm109, %v107
  // Predicated region
  $region26: #{tpu_custom_call.1} parent=0 // pred_check
    _
  $region27: #{tpu_custom_call.1} parent=0 // pred_check_branch
    %112 = sbr.rel (0) target = $region29
  $region28: #{tpu_custom_call.1} parent=0 // pred_region
    _
  $region29: #{tpu_custom_call.1} parent=0 // pred_fallthru
    _
  // Predicated region
  $region30: #{tpu_custom_call.1} parent=0 // pred_check
    _
  $region31: #{tpu_custom_call.1} parent=0 // pred_check_branch
    %114 = sbr.rel (0) target = $region33
  $region32: #{tpu_custom_call.1} parent=0 // pred_region
    _
  $region33: #{tpu_custom_call.1} parent=0 // pred_fallthru
    _

</llo_original>
